<compile_context>
chip_gen: v7x
topology: tpu7x:2x2x1
jax: 0.10.0
libtpu: 0.0.40
codegen_flags: <defaults>
</compile_context>

<pallas_src>
import jax
import jax.numpy as jnp
from jax.experimental import pallas as pl
from jax.experimental.pallas import tpu as pltpu

N_KEY_CLASS = 12
KDN_HIDDEN_DIMS = [32, 16]          # stands in for hps.kdn_hidden_dims


def _round_up(x, m):
    return -(-x // m) * m


def _vmem_capacity_bytes():
    try:
        return int(pltpu.get_tpu_info().vmem_capacity_bytes)
    except Exception:
        return 64 << 20             # conservative fallback (v7x-sized VMEM)


def _sublane_mult(itemsize):
    # Native sublane packing: f32 -> 8, bf16/f16 -> 16, int8/fp8/bool -> 32.
    return {4: 8, 2: 16, 1: 32}.get(itemsize, 8)


def _choose_tiles(B, T, P, itemsize, in_tile_budget_bytes):
    """Pick (bB, bT).

    bB: grow toward 128 (lane-dense output stores, fewer grid steps / epilogue runs),
        but keep >= 2 B tiles whenever B >= 2 so both v7x TensorCores get work.
    bT: fill the per-block budget; multiple of the dtype's sublane packing, or == T.
    """
    bB = min(_round_up(B, 8), 128)
    if B >= 2 and -(-B // bB) < 2:
        bB = -(-B // 2)             # split the batch so the parallel axis has 2 tiles
    bB = min(bB, B)

    mult = _sublane_mult(itemsize)
    row_bytes = max(1, bB * P * itemsize)
    max_bt = max(mult, in_tile_budget_bytes // row_bytes)
    if T <= max_bt:
        bT = T
    else:
        bT = max(mult, (max_bt // mult) * mult)
    return bB, bT


def _make_kernel(*, bT, nT, T, H1, H2):
    rem = T - (nT - 1) * bT         # valid rows in the final T block (== bT if T % bT == 0)

    def kernel(prbt_ref, w1_ref, b_ref, w2_ref, w3_ref, out_ref, acc_ref):
        t_idx = pl.program_id(1)

        @pl.when(t_idx == 0)
        def _init():
            acc_ref[...] = jnp.zeros_like(acc_ref)

        def _accum(x):
            acc_ref[...] += jnp.sum(x.astype(jnp.float32), axis=1)      # (bB, P)

        if rem == bT:
            # T divides evenly into bT blocks: unmasked streamed reduction.
            _accum(prbt_ref[...])
        else:
            @pl.when(t_idx < nT - 1)
            def _full():
                _accum(prbt_ref[...])

            @pl.when(t_idx == nT - 1)
            def _tail():
                # Ragged T tail: the block overhangs the array; out-of-bounds rows hold
                # unspecified data, so mask them before reducing (rem is static).
                x = prbt_ref[...].astype(jnp.float32)
                row = jax.lax.broadcasted_iota(jnp.int32, x.shape, 1)
                acc_ref[...] += jnp.sum(jnp.where(row < rem, x, 0.0), axis=1)

        @pl.when(t_idx == nT - 1)
        def _epilogue():
            # Tiny 3-layer sigmoid MLP, once per B tile (octave fold fused into w1).
            x = acc_ref[...]                                            # (bB, P)
            b = b_ref[...]                                              # (1, H1+H2+1)
            h = jax.nn.sigmoid(
                jnp.dot(x, w1_ref[...], preferred_element_type=jnp.float32)
                + b[:, :H1])
            h = jax.nn.sigmoid(
                jnp.dot(h, w2_ref[...], preferred_element_type=jnp.float32)
                + b[:, H1:H1 + H2])
            o = jax.nn.sigmoid(
                jnp.dot(h, w3_ref[...], preferred_element_type=jnp.float32)
                + b[:, H1 + H2:])
            out_ref[...] = o.reshape(out_ref.shape)                     # (1, 1, bB)

    return kernel


def key_disc_forward(prbt, params, *, in_tile_budget_bytes=None):
    B, T, P = prbt.shape
    assert P % N_KEY_CLASS == 0
    w1, b1, w2, b2, w3, b3 = params

    # Fuse the octave-fold (P -> 12) one-hot into the first Linear (exact):
    #   x.view(B,-1,12).sum(1) @ w1  ==  x @ (fold @ w1)
    fold = jax.nn.one_hot(jnp.arange(P) % N_KEY_CLASS, N_KEY_CLASS, dtype=jnp.float32)
    w1_eff = fold @ w1                                                  # (P, H1)
    H1, H2 = w1_eff.shape[1], w2.shape[1]
    b_cat = jnp.concatenate([b1, b2, b3], axis=1)                       # (1, H1+H2+1)

    vmem_cap = _vmem_capacity_bytes()
    if in_tile_budget_bytes is None:
        # ~16 MiB blocks on v7x (64 MiB VMEM, ~3.2 TB/s HBM -> <7% per-step overhead),
        # ~24 MiB on v5e/v6e (128 MiB VMEM).  On v5e the dominant lever is the input
        # dtype, which is streamed natively below (int8/bool piano rolls = 4x fewer bytes).
        in_tile_budget_bytes = (16 << 20) if vmem_cap <= (64 << 20) else (24 << 20)
    # Never let the double-buffered input block outgrow physical VMEM.
    in_tile_budget_bytes = min(in_tile_budget_bytes,
                               max(1 << 20, (vmem_cap - (8 << 20)) // 2))

    itemsize = jnp.dtype(prbt.dtype).itemsize
    bB, bT = _choose_tiles(B, T, P, itemsize, in_tile_budget_bytes)
    nB, nT = -(-B // bB), -(-T // bT)
    # TODO(synk): for B == 1 only one TensorCore gets work on v7x; engaging the second
    # core would need a two-stage T-split (per-core partial sums combined afterwards).

    in_block_bytes = bB * bT * P * itemsize
    param_bytes = 4 * (w1_eff.size + b_cat.size + w2.size + w3.size)
    footprint = int(2 * in_block_bytes                    # double-buffered prbt block
                    + 2 * param_bytes                     # resident weights (+ slack)
                    + bB * P * 4                          # f32 accumulator scratch
                    + 2 * _round_up(bB, 128) * 8 * 4      # output block (padded tile)
                    + (2 << 20))                          # compiler headroom
    vmem_limit = int(min(max(footprint, 32 << 20), 0.75 * vmem_cap))
    vmem_limit = max(vmem_limit, footprint)               # never below the real buffers
    vmem_limit = min(vmem_limit, vmem_cap)                # never above physical VMEM

    cost = pl.CostEstimate(
        flops=B * T * P + 2 * B * (P * H1 + H1 * H2 + H2),
        transcendentals=B * (H1 + H2 + 1),
        bytes_accessed=B * T * P * itemsize + param_bytes + 4 * B,
    )

    kernel = _make_kernel(bT=bT, nT=nT, T=T, H1=H1, H2=H2)

    grid_spec = pltpu.PrefetchScalarGridSpec(
        num_scalar_prefetch=0,
        grid=(nB, nT),
        in_specs=[
            pl.BlockSpec((bB, bT, P), lambda b, t: (b, t, 0)),          # streamed prbt
            pl.BlockSpec((P, H1), lambda b, t: (0, 0)),                 # w1 (fold fused)
            pl.BlockSpec((1, H1 + H2 + 1), lambda b, t: (0, 0)),        # concat biases
            pl.BlockSpec((H1, H2), lambda b, t: (0, 0)),                # w2
            pl.BlockSpec((H2, 1), lambda b, t: (0, 0)),                 # w3
        ],
        out_specs=pl.BlockSpec((1, 1, bB), lambda b, t: (b, 0, 0)),
        scratch_shapes=[pltpu.VMEM((bB, P), jnp.float32)],
    )

    out = pl.pallas_call(
        kernel,
        out_shape=jax.ShapeDtypeStruct((nB, 1, bB), jnp.float32),
        grid_spec=grid_spec,
        compiler_params=pltpu.CompilerParams(
            dimension_semantics=("parallel", "arbitrary"),
            vmem_limit_bytes=vmem_limit),
        cost_estimate=cost,
    )(prbt, w1_eff, b_cat, w2, w3)

    out = out.reshape(nB * bB)[:B]
    return jnp.squeeze(out)                     # matches PyTorch .squeeze()


def init_params(key):
    """Deterministic Linear params: [12] + KDN_HIDDEN_DIMS + [1].
    PyTorch nn.Linear init is U(-1/sqrt(fan_in), 1/sqrt(fan_in))."""
    dims = [N_KEY_CLASS] + KDN_HIDDEN_DIMS + [1]
    params = []
    for i in range(1, len(dims)):
        fan_in, fan_out = dims[i - 1], dims[i]
        key, kw, kb = jax.random.split(key, 3)
        bound = 1.0 / jnp.sqrt(fan_in)
        w = jax.random.uniform(kw, (fan_in, fan_out), jnp.float32, -bound, bound)
        b = jax.random.uniform(kb, (1, fan_out), jnp.float32, -bound, bound)
        params += [w, b]
    return tuple(params)


def reference_forward(prbt, params):
    """Plain-JAX reference mirroring the PyTorch module, for verification."""
    B, T, P = prbt.shape
    x = jnp.sum(prbt.astype(jnp.float32), axis=1)
    x = x.reshape(B, -1, N_KEY_CLASS).sum(axis=1)                       # (B, 12)
    w1, b1, w2, b2, w3, b3 = params
    h = jax.nn.sigmoid(x @ w1 + b1)
    h = jax.nn.sigmoid(h @ w2 + b2)
    o = jax.nn.sigmoid(h @ w3 + b3)
    return jnp.squeeze(o)


if __name__ == "__main__":
    key = jax.random.PRNGKey(0)
    k1, k2, k3, k_params = jax.random.split(key, 4)
    params = init_params(k_params)

    # Case 1: small f32 shape, single T step, 2 B tiles (B=2, T=8, P=24).
    B, T, P = 2, 8, 24
    prbt = jax.random.bernoulli(k1, 0.3, (B, T, P)).astype(jnp.float32)
    out = jax.block_until_ready(key_disc_forward(prbt, params))
    ref = reference_forward(prbt, params)
    assert out.shape == (B,)
    assert jnp.allclose(out, ref, atol=1e-5, rtol=1e-5), (out, ref)

    # Case 2: ragged B AND ragged T (exercises cdiv grid + in-kernel tail masking),
    # tiny tile budget forces multi-step T accumulation (bB=6, bT=16, rem=8).
    B2, T2, P2 = 11, 40, 24
    prbt2 = jax.random.bernoulli(k2, 0.3, (B2, T2, P2)).astype(jnp.float32)
    out2 = jax.block_until_ready(
        key_disc_forward(prbt2, params, in_tile_budget_bytes=12288))
    ref2 = reference_forward(prbt2, params)
    assert out2.shape == (B2,)
    assert jnp.allclose(out2, ref2, atol=1e-5, rtol=1e-5), (out2, ref2)

    # Case 3: int8 binary piano roll streamed in its narrow storage dtype
    # (4x fewer HBM bytes than f32; cast to f32 happens inside the kernel).
    B3, T3, P3 = 3, 64, 24
    prbt3 = jax.random.bernoulli(k3, 0.3, (B3, T3, P3)).astype(jnp.int8)
    out3 = jax.block_until_ready(key_disc_forward(prbt3, params))
    ref3 = reference_forward(prbt3, params)
    assert out3.shape == (B3,)
    assert jnp.allclose(out3, ref3, atol=1e-5, rtol=1e-5), (out3, ref3)

    print("KERNEL_OK")
</pallas_src>

<mosaic_0001>
module attributes {stable_mosaic.version = 11 : i64} {
  func.func @kernel(%arg0: i32, %arg1: i32, %arg2: memref<1x8x24xf32, #tpu.memory_space<vmem>>, %arg3: memref<24x32xf32, #tpu.memory_space<vmem>>, %arg4: memref<1x49xf32, #tpu.memory_space<vmem>>, %arg5: memref<32x16xf32, #tpu.memory_space<vmem>>, %arg6: memref<16x1xf32, #tpu.memory_space<vmem>>, %arg7: memref<1x1x1xf32, #tpu.memory_space<vmem>>, %arg8: memref<1x24xf32, #tpu.memory_space<vmem>>) attributes {dimension_semantics = [#tpu.dimension_semantics<parallel>, #tpu.dimension_semantics<arbitrary>], iteration_bounds = array<i64: 2, 1>, scalar_prefetch = 0 : i64, scratch_operands = 1 : i64, tpu.core_type = #tpu.core_type<tc>, window_params = [{transform_indices = @transform_0, window_bounds = array<i64: 1, 8, 24>}, {pipeline_mode = #tpu.pipeline_mode<synchronous>, transform_indices = @transform_1, window_bounds = array<i64: 24, 32>}, {pipeline_mode = #tpu.pipeline_mode<synchronous>, transform_indices = @transform_2, window_bounds = array<i64: 1, 49>}, {pipeline_mode = #tpu.pipeline_mode<synchronous>, transform_indices = @transform_3, window_bounds = array<i64: 32, 16>}, {pipeline_mode = #tpu.pipeline_mode<synchronous>, transform_indices = @transform_4, window_bounds = array<i64: 16, 1>}, {transform_indices = @transform_5, window_bounds = array<i64: 1, 1, 1>}]} {
    %c0_i32 = arith.constant 0 : i32
    %0 = arith.cmpi eq, %arg1, %c0_i32 : i32
    %1 = arith.extui %0 : i1 to i32
    %c0_i32_0 = arith.constant 0 : i32
    %2 = arith.cmpi ne, %1, %c0_i32_0 : i32
    scf.if %2 {
      %cst_9 = arith.constant 0.000000e+00 : f32
      %11 = vector.broadcast %cst_9 : f32 to vector<1x24xf32>
      %c0_10 = arith.constant 0 : index
      %c0_11 = arith.constant 0 : index
      %12 = vector.load %arg8[%c0_10, %c0_11] : memref<1x24xf32, #tpu.memory_space<vmem>>, vector<1x24xf32>
      tpu.vector_store %arg8[%c0_10, %c0_11], %11 {strides = array<i32>} : memref<1x24xf32, #tpu.memory_space<vmem>>, vector<1x24xf32>,
    } else {
    }
    %c0 = arith.constant 0 : index
    %c0_1 = arith.constant 0 : index
    %c0_2 = arith.constant 0 : index
    %3 = vector.load %arg2[%c0, %c0_1, %c0_2] : memref<1x8x24xf32, #tpu.memory_space<vmem>>, vector<1x8x24xf32>
    %c0_3 = arith.constant 0 : index
    %c0_4 = arith.constant 0 : index
    %4 = vector.load %arg8[%c0_3, %c0_4] : memref<1x24xf32, #tpu.memory_space<vmem>>, vector<1x24xf32>
    %cst = arith.constant dense<0.000000e+00> : vector<1x24xf32>
    %5 = vector.multi_reduction <add>, %3, %cst [1] : vector<1x8x24xf32> to vector<1x24xf32>
    %6 = arith.addf %4, %5 : vector<1x24xf32>
    %c0_5 = arith.constant 0 : index
    %c0_6 = arith.constant 0 : index
    %7 = vector.load %arg8[%c0_5, %c0_6] : memref<1x24xf32, #tpu.memory_space<vmem>>, vector<1x24xf32>
    tpu.vector_store %arg8[%c0_5, %c0_6], %6 {strides = array<i32>} : memref<1x24xf32, #tpu.memory_space<vmem>>, vector<1x24xf32>,
    %c0_i32_7 = arith.constant 0 : i32
    %8 = arith.cmpi eq, %arg1, %c0_i32_7 : i32
    %9 = arith.extui %8 : i1 to i32
    %c0_i32_8 = arith.constant 0 : i32
    %10 = arith.cmpi ne, %9, %c0_i32_8 : i32
    scf.if %10 {
      %c0_9 = arith.constant 0 : index
      %c0_10 = arith.constant 0 : index
      %11 = vector.load %arg8[%c0_9, %c0_10] : memref<1x24xf32, #tpu.memory_space<vmem>>, vector<1x24xf32>
      %c0_11 = arith.constant 0 : index
      %c0_12 = arith.constant 0 : index
      %12 = vector.load %arg4[%c0_11, %c0_12] : memref<1x49xf32, #tpu.memory_space<vmem>>, vector<1x49xf32>
      %c0_13 = arith.constant 0 : index
      %c0_14 = arith.constant 0 : index
      %13 = vector.load %arg3[%c0_13, %c0_14] : memref<24x32xf32, #tpu.memory_space<vmem>>, vector<24x32xf32>
      %cst_15 = arith.constant dense<0.000000e+00> : vector<1x32xf32>
      %14 = tpu.matmul %11, %13, %cst_15 {dimension_numbers = #tpu.dot_dimension_numbers<[1], [0], [0], [1], [0, 0, 1, 1], [], []>} : vector<1x24xf32>, vector<24x32xf32>, vector<1x32xf32> -> vector<1x32xf32>
      %15 = vector.extract_strided_slice %12 {offsets = [0, 0], sizes = [1, 32], strides = [1, 1]} : vector<1x49xf32> to vector<1x32xf32>
      %16 = arith.addf %14, %15 : vector<1x32xf32>
      %17 = arith.negf %16 : vector<1x32xf32>
      %18 = math.exp %17 : vector<1x32xf32>
      %cst_16 = arith.constant 1.000000e+00 : f32
      %19 = vector.broadcast %cst_16 : f32 to vector<1x32xf32>
      %20 = arith.addf %19, %18 : vector<1x32xf32>
      %21 = arith.divf %19, %20 : vector<1x32xf32>
      %c0_17 = arith.constant 0 : index
      %c0_18 = arith.constant 0 : index
      %22 = vector.load %arg5[%c0_17, %c0_18] : memref<32x16xf32, #tpu.memory_space<vmem>>, vector<32x16xf32>
      %cst_19 = arith.constant dense<0.000000e+00> : vector<1x16xf32>
      %23 = tpu.matmul %21, %22, %cst_19 {dimension_numbers = #tpu.dot_dimension_numbers<[1], [0], [0], [1], [0, 0, 1, 1], [], []>} : vector<1x32xf32>, vector<32x16xf32>, vector<1x16xf32> -> vector<1x16xf32>
      %24 = vector.extract_strided_slice %12 {offsets = [0, 32], sizes = [1, 16], strides = [1, 1]} : vector<1x49xf32> to vector<1x16xf32>
      %25 = arith.addf %23, %24 : vector<1x16xf32>
      %26 = arith.negf %25 : vector<1x16xf32>
      %27 = math.exp %26 : vector<1x16xf32>
      %cst_20 = arith.constant 1.000000e+00 : f32
      %28 = vector.broadcast %cst_20 : f32 to vector<1x16xf32>
      %29 = arith.addf %28, %27 : vector<1x16xf32>
      %30 = arith.divf %28, %29 : vector<1x16xf32>
      %c0_21 = arith.constant 0 : index
      %c0_22 = arith.constant 0 : index
      %31 = vector.load %arg6[%c0_21, %c0_22] : memref<16x1xf32, #tpu.memory_space<vmem>>, vector<16x1xf32>
      %cst_23 = arith.constant dense<0.000000e+00> : vector<1x1xf32>
      %32 = tpu.matmul %30, %31, %cst_23 {dimension_numbers = #tpu.dot_dimension_numbers<[1], [0], [0], [1], [0, 0, 1, 1], [], []>} : vector<1x16xf32>, vector<16x1xf32>, vector<1x1xf32> -> vector<1x1xf32>
      %33 = vector.extract_strided_slice %12 {offsets = [0, 48], sizes = [1, 1], strides = [1, 1]} : vector<1x49xf32> to vector<1x1xf32>
      %34 = arith.addf %32, %33 : vector<1x1xf32>
      %35 = arith.negf %34 : vector<1x1xf32>
      %36 = math.exp %35 : vector<1x1xf32>
      %cst_24 = arith.constant 1.000000e+00 : f32
      %37 = vector.broadcast %cst_24 : f32 to vector<1x1xf32>
      %38 = arith.addf %37, %36 : vector<1x1xf32>
      %39 = arith.divf %37, %38 : vector<1x1xf32>
      %40 = vector.shape_cast %39 : vector<1x1xf32> to vector<1x1x1xf32>
      %c0_25 = arith.constant 0 : index
      %c0_26 = arith.constant 0 : index
      %c0_27 = arith.constant 0 : index
      %41 = vector.load %arg7[%c0_25, %c0_26, %c0_27] : memref<1x1x1xf32, #tpu.memory_space<vmem>>, vector<1x1x1xf32>
      tpu.vector_store %arg7[%c0_25, %c0_26, %c0_27], %40 {strides = array<i32>} : memref<1x1x1xf32, #tpu.memory_space<vmem>>, vector<1x1x1xf32>,
    } else {
    }
    return
  }
  func.func @transform_0(%arg0: i32, %arg1: i32) -> (i32, i32, i32) {
    %c0_i32 = arith.constant 0 : i32
    %c0_i32_0 = arith.constant 0 : i32
    return %arg0, %arg1, %c0_i32 : i32, i32, i32
  }
  func.func @transform_1(%arg0: i32, %arg1: i32) -> (i32, i32) {
    %c0_i32 = arith.constant 0 : i32
    %c0_i32_0 = arith.constant 0 : i32
    %c0_i32_1 = arith.constant 0 : i32
    return %c0_i32, %c0_i32_0 : i32, i32
  }
  func.func @transform_2(%arg0: i32, %arg1: i32) -> (i32, i32) {
    %c0_i32 = arith.constant 0 : i32
    %c0_i32_0 = arith.constant 0 : i32
    %c0_i32_1 = arith.constant 0 : i32
    return %c0_i32, %c0_i32_0 : i32, i32
  }
  func.func @transform_3(%arg0: i32, %arg1: i32) -> (i32, i32) {
    %c0_i32 = arith.constant 0 : i32
    %c0_i32_0 = arith.constant 0 : i32
    %c0_i32_1 = arith.constant 0 : i32
    return %c0_i32, %c0_i32_0 : i32, i32
  }
  func.func @transform_4(%arg0: i32, %arg1: i32) -> (i32, i32) {
    %c0_i32 = arith.constant 0 : i32
    %c0_i32_0 = arith.constant 0 : i32
    %c0_i32_1 = arith.constant 0 : i32
    return %c0_i32, %c0_i32_0 : i32, i32
  }
  func.func @transform_5(%arg0: i32, %arg1: i32) -> (i32, i32, i32) {
    %c0_i32 = arith.constant 0 : i32
    %c0_i32_0 = arith.constant 0 : i32
    %c0_i32_1 = arith.constant 0 : i32
    return %arg0, %c0_i32, %c0_i32_0 : i32, i32, i32
  }
}

</mosaic_0001>

<llo_original>
// kernel: tpu_custom_call.1
$region0: #{tpu_custom_call.1}
  #allocation0 [shape = 'u32[]', space=smem, size = 0x4, offset = 0x4, fixed_abs, tag = 'smem constant byte address 0x4 - core index']
  #allocation1 [shape = 'u32[144,128]{1,0:T(1,128)}', space=vmem, size = 0x12000, scoped, tag = 'internal scratch']
  #allocation2 [shape = 'f32[1,24]{1,0:T(1,128)}', space=vmem, size = 0x200, scoped, tag = 'scratch operand']
  %s0 = inlined_call_operand.vmem [shape: f32[2,8,24], index: 0, kind: input, shape index: {}]
  %s1 = inlined_call_operand.vmem [shape: f32[24,32], index: 1, kind: input, shape index: {}]
  %s2 = inlined_call_operand.vmem [shape: f32[1,49], index: 2, kind: input, shape index: {}]
  %s3 = inlined_call_operand.vmem [shape: f32[32,16], index: 3, kind: input, shape index: {}]
  %s4 = inlined_call_operand.vmem [shape: f32[16,1], index: 4, kind: input, shape index: {}]
  %s5 = inlined_call_operand.vmem [shape: f32[2,1,1], index: 5, kind: output, shape index: {}]
  %s6 = sld [smem:[#allocation0]]
  $region61: #{tpu_custom_call.1} parent=0
    _
  %s8 = ssub.s32 1, %s6
  %s9 = scalar_select 0, %s8, %s6
  loop: start=0, step=1, limit=4
  $region2: #{tpu_custom_call.1} parent=0 // loop_pre_header
    _
  $region3: #{tpu_custom_call.1} parent=0 // loop_header
    %s11 = sphi 0, %s15
    %p12 = scmp.ge.s32.totalorder %s11, 4
    %s18 = sphi 0, %s30
    %s19 = sphi 0, %s26
    %s20 = sphi 0, %s18
    %s21 = sphi 0, %s19
    %s22 = sphi 0, %s20
    %s23 = sphi 0, %s21
    %s35 = sphi 0, %s37
    %s38 = sphi 0, %s35
    %s39 = sphi 0, %s38
    %s55 = sphi 0, %s39
    %s59 = sphi 0, %s59
    %s61 = sphi 0, %s59
    %s62 = sphi 0, %s61
    %s76 = sphi 0, %s62
    %s80 = sphi 0, %s80
    %s82 = sphi 0, %s80
    %s83 = sphi 0, %s82
    %s97 = sphi 0, %s83
    %s101 = sphi 0, %s101
    %s103 = sphi 0, %s101
    %s104 = sphi 0, %s103
    %s118 = sphi 0, %s104
    %s122 = sphi 0, %s122
    %s124 = sphi 0, %s122
    %s125 = sphi 0, %s124
    %s139 = sphi 0, %s125
    %s145 = sphi 0, %s147
    %s148 = sphi 0, %s145
    %s149 = sphi 0, %s148
    %s165 = sphi 0, %s149
  $region4: #{tpu_custom_call.1} parent=0 // loop_header_branch
    %14 = sbr.rel (%p12) target = $region8
  $region5: #{tpu_custom_call.1} parent=0 // loop_body
    %s16 = ssub.s32 %s11, 1
    %s17 = ssub.s32 %s11, 2
    %s24 = sadd.s32 1, %s19
    %p25 = scmp.ge.s32.totalorder %s24, 1
    %s26 = scalar_select %p25, 0, %s24
    %s27 = sadd.s32 1, %s18
    %s28 = scalar_select %p25, %s27, %s18
    %p29 = scmp.ge.s32.totalorder %s28, 2
    %s30 = scalar_select %p29, 0, %s28
    %s31 = ssub.s32 %s18, %s30
    %s32 = ssub.s32 %s19, %s26
    %s33 = sor.u32 %s31, %s32
    %p34 = scmp.eq.s32.totalorder %s33, 0
    %s36 = sadd.s32 %s35, 1
    %s37 = scalar_select %p34, %s35, %s36
    %p40 = pneg %p34
    %p41 = scmp.eq.s32.totalorder %s11, 1
    %p42 = por %p40, %p41
    %p43 = scmp.ne.s32.totalorder %s35, %s38
    %p44 = scmp.eq.s32.totalorder %s11, 0
    %p45 = por %p43, %p44
    %p46 = scmp.ne.s32.totalorder %s35, %s38
    %p47 = scmp.eq.s32.totalorder %s16, 1
    %p48 = por %p46, %p47
    %p49 = scmp.ne.s32.totalorder %s38, %s39
    %p50 = scmp.eq.s32.totalorder %s16, 0
    %p51 = por %p49, %p50
    %p52 = scmp.ne.s32.totalorder %s38, %s39
    %p53 = scmp.eq.s32.totalorder %s17, 1
    %p54 = por %p52, %p53
    %p56 = scmp.ne.s32.totalorder %s39, %s55
    %p57 = scmp.eq.s32.totalorder %s17, 0
    %p58 = por %p56, %p57
    %s60 = sadd.s32 %s59, 1
    %p63 = scmp.eq.s32.totalorder %s11, 1
    %p64 = scmp.ne.s32.totalorder %s59, %s61
    %p65 = scmp.eq.s32.totalorder %s11, 0
    %p66 = por %p64, %p65
    %p67 = scmp.ne.s32.totalorder %s59, %s61
    %p68 = scmp.eq.s32.totalorder %s16, 1
    %p69 = por %p67, %p68
    %p70 = scmp.ne.s32.totalorder %s61, %s62
    %p71 = scmp.eq.s32.totalorder %s16, 0
    %p72 = por %p70, %p71
    %p73 = scmp.ne.s32.totalorder %s61, %s62
    %p74 = scmp.eq.s32.totalorder %s17, 1
    %p75 = por %p73, %p74
    %p77 = scmp.ne.s32.totalorder %s62, %s76
    %p78 = scmp.eq.s32.totalorder %s17, 0
    %p79 = por %p77, %p78
    %s81 = sadd.s32 %s80, 1
    %p84 = scmp.eq.s32.totalorder %s11, 1
    %p85 = scmp.ne.s32.totalorder %s80, %s82
    %p86 = scmp.eq.s32.totalorder %s11, 0
    %p87 = por %p85, %p86
    %p88 = scmp.ne.s32.totalorder %s80, %s82
    %p89 = scmp.eq.s32.totalorder %s16, 1
    %p90 = por %p88, %p89
    %p91 = scmp.ne.s32.totalorder %s82, %s83
    %p92 = scmp.eq.s32.totalorder %s16, 0
    %p93 = por %p91, %p92
    %p94 = scmp.ne.s32.totalorder %s82, %s83
    %p95 = scmp.eq.s32.totalorder %s17, 1
    %p96 = por %p94, %p95
    %p98 = scmp.ne.s32.totalorder %s83, %s97
    %p99 = scmp.eq.s32.totalorder %s17, 0
    %p100 = por %p98, %p99
    %s102 = sadd.s32 %s101, 1
    %p105 = scmp.eq.s32.totalorder %s11, 1
    %p106 = scmp.ne.s32.totalorder %s101, %s103
    %p107 = scmp.eq.s32.totalorder %s11, 0
    %p108 = por %p106, %p107
    %p109 = scmp.ne.s32.totalorder %s101, %s103
    %p110 = scmp.eq.s32.totalorder %s16, 1
    %p111 = por %p109, %p110
    %p112 = scmp.ne.s32.totalorder %s103, %s104
    %p113 = scmp.eq.s32.totalorder %s16, 0
    %p114 = por %p112, %p113
    %p115 = scmp.ne.s32.totalorder %s103, %s104
    %p116 = scmp.eq.s32.totalorder %s17, 1
    %p117 = por %p115, %p116
    %p119 = scmp.ne.s32.totalorder %s104, %s118
    %p120 = scmp.eq.s32.totalorder %s17, 0
    %p121 = por %p119, %p120
    %s123 = sadd.s32 %s122, 1
    %p126 = scmp.eq.s32.totalorder %s11, 1
    %p127 = scmp.ne.s32.totalorder %s122, %s124
    %p128 = scmp.eq.s32.totalorder %s11, 0
    %p129 = por %p127, %p128
    %p130 = scmp.ne.s32.totalorder %s122, %s124
    %p131 = scmp.eq.s32.totalorder %s16, 1
    %p132 = por %p130, %p131
    %p133 = scmp.ne.s32.totalorder %s124, %s125
    %p134 = scmp.eq.s32.totalorder %s16, 0
    %p135 = por %p133, %p134
    %p136 = scmp.ne.s32.totalorder %s124, %s125
    %p137 = scmp.eq.s32.totalorder %s17, 1
    %p138 = por %p136, %p137
    %p140 = scmp.ne.s32.totalorder %s125, %s139
    %p141 = scmp.eq.s32.totalorder %s17, 0
    %p142 = por %p140, %p141
    %s143 = ssub.s32 %s18, %s30
    %p144 = scmp.eq.s32.totalorder %s143, 0
    %s146 = sadd.s32 %s145, 1
    %s147 = scalar_select %p144, %s145, %s146
    %p150 = pneg %p144
    %p151 = scmp.eq.s32.totalorder %s11, 1
    %p152 = por %p150, %p151
    %p153 = scmp.ne.s32.totalorder %s145, %s148
    %p154 = scmp.eq.s32.totalorder %s11, 0
    %p155 = por %p153, %p154
    %p156 = scmp.ne.s32.totalorder %s145, %s148
    %p157 = scmp.eq.s32.totalorder %s16, 1
    %p158 = por %p156, %p157
    %p159 = scmp.ne.s32.totalorder %s148, %s149
    %p160 = scmp.eq.s32.totalorder %s16, 0
    %p161 = por %p159, %p160
    %p162 = scmp.ne.s32.totalorder %s148, %s149
    %p163 = scmp.eq.s32.totalorder %s17, 1
    %p164 = por %p162, %p163
    %p166 = scmp.ne.s32.totalorder %s149, %s165
    %p167 = scmp.eq.s32.totalorder %s17, 0
    %p168 = por %p166, %p167
    %p169 = scmp.le.s32.totalorder 1, %s11
    %p170 = scmp.lt.s32.totalorder %s11, 3
    %p171 = pnand %p169, %p170
    %p172 = pneg %p171
    // Predicated region
    $region9: #{tpu_custom_call.1} parent=5 // pred_check
      _
    $region10: #{tpu_custom_call.1} parent=5 // pred_check_branch
      %174 = sbr.rel (%p171) target = $region12
    $region11: #{tpu_custom_call.1} parent=5 // pred_region
      %s175 = ssub.s32 %s11, 1
      // Predicated region
      $region13: #{tpu_custom_call.1} parent=11 // pred_check
        %p176 = pneg %p72
      $region14: #{tpu_custom_call.1} parent=11 // pred_check_branch
        %178 = sbr.rel (%p176) target = $region16
      $region15: #{tpu_custom_call.1} parent=11 // pred_region
        _
      $region16: #{tpu_custom_call.1} parent=11 // pred_fallthru
        _
      // Predicated region
      $region17: #{tpu_custom_call.1} parent=11 // pred_check
        %p179 = pneg %p93
      $region18: #{tpu_custom_call.1} parent=11 // pred_check_branch
        %181 = sbr.rel (%p179) target = $region20
      $region19: #{tpu_custom_call.1} parent=11 // pred_region
        _
      $region20: #{tpu_custom_call.1} parent=11 // pred_fallthru
        _
      // Predicated region
      $region21: #{tpu_custom_call.1} parent=11 // pred_check
        %p182 = pneg %p114
      $region22: #{tpu_custom_call.1} parent=11 // pred_check_branch
        %184 = sbr.rel (%p182) target = $region24
      $region23: #{tpu_custom_call.1} parent=11 // pred_region
        _
      $region24: #{tpu_custom_call.1} parent=11 // pred_fallthru
        _
      // Predicated region
      $region25: #{tpu_custom_call.1} parent=11 // pred_check
        %p185 = pneg %p135
      $region26: #{tpu_custom_call.1} parent=11 // pred_check_branch
        %187 = sbr.rel (%p185) target = $region28
      $region27: #{tpu_custom_call.1} parent=11 // pred_region
        _
      $region28: #{tpu_custom_call.1} parent=11 // pred_fallthru
        _
    $region12: #{tpu_custom_call.1} parent=5 // pred_fallthru
      _
    %p188 = scmp.lt.s32.totalorder %s11, 2
    // Predicated region
    $region29: #{tpu_custom_call.1} parent=5 // pred_check
      %p189 = pneg %p188
    $region30: #{tpu_custom_call.1} parent=5 // pred_check_branch
      %191 = sbr.rel (%p189) target = $region32
    $region31: #{tpu_custom_call.1} parent=5 // pred_region
      // Predicated region
      $region33: #{tpu_custom_call.1} parent=31 // pred_check
        %p192 = pneg %p45
      $region34: #{tpu_custom_call.1} parent=31 // pred_check_branch
        %194 = sbr.rel (%p192) target = $region36
      $region35: #{tpu_custom_call.1} parent=31 // pred_region
        %p195 = scmp.lt.s32.totalorder %s18, 1
        %s196 = scalar_select %p195, %s18, 1
        %p197 = scmp.lt.s32.totalorder %s19, 0
        %s198 = scalar_select %p197, %s19, 0
        %s199 = sadd.s32 %s198, %s196
        %s200 = smul.addr %s199, 8
        %s201 = scalar_lea.vmem %s0, %s200
      $region36: #{tpu_custom_call.1} parent=31 // pred_fallthru
        _
    $region32: #{tpu_custom_call.1} parent=5 // pred_fallthru
      _
    %p202 = scmp.le.s32.totalorder 1, %s11
    %p203 = scmp.lt.s32.totalorder %s11, 3
    %p204 = pnand %p202, %p203
    %p205 = pneg %p204
    // Predicated region
    $region37: #{tpu_custom_call.1} parent=5 // pred_check
      _
    $region38: #{tpu_custom_call.1} parent=5 // pred_check_branch
      %207 = sbr.rel (%p204) target = $region40
    $region39: #{tpu_custom_call.1} parent=5 // pred_region
      %s208 = ssub.s32 %s11, 1
      %p209 = scmp.lt.s32.totalorder %s20, 1
      %s210 = scalar_select %p209, %s20, 1
      %p211 = scmp.lt.s32.totalorder %s21, 0
      %s212 = scalar_select %p211, %s21, 0
      %s213 = sadd.s32 %s212, %s210
      %s214 = smul.addr %s213, 8
      %s215 = scalar_lea.vmem %s0, %s214
      %p216 = pneg %p51
      %p217 = pneg %p48
      %p218 = pneg %p72
      %p219 = pneg %p69
      %p220 = pneg %p93
      %p221 = pneg %p90
      %p222 = pneg %p114
      %p223 = pneg %p111
      %p224 = pneg %p135
      %p225 = pneg %p132
      %p226 = pneg %p161
      %p227 = pneg %p158
      %p228 = scmp.lt.s32.totalorder %s20, 1
      %s229 = scalar_select %p228, %s20, 1
      %s230 = scalar_lea.vmem %s5, %s229
      %p231 = scmp.lt.s32.totalorder %s20, 1
      %s232 = scalar_select %p231, %s20, 1
      %p233 = scmp.lt.s32.totalorder %s21, 0
      %s234 = scalar_select %p233, %s21, 0
      %s235 = sadd.s32 %s234, %s232
      %s236 = smul.addr %s235, 8
      %s237 = scalar_lea.vmem %s0, %s236
      %p238 = scmp.lt.s32.totalorder %s20, 1
      %s239 = scalar_select %p238, %s20, 1
      %s240 = scalar_lea.vmem %s5, %s239
      %p241 = scmp.eq.s32.totalorder %s21, 0
      // Predicated region
      $region41: #{tpu_custom_call.1} parent=39 // pred_check
        %p242 = pneg %p241
      $region42: #{tpu_custom_call.1} parent=39 // pred_check_branch
        %244 = sbr.rel (%p242) target = $region44
      $region43: #{tpu_custom_call.1} parent=39 // pred_region
        %vm245 = vcmask 188416
        %246 = vst.msk [vmem:[#allocation2] sm:$0x1] %vm245, 0.0
      $region44: #{tpu_custom_call.1} parent=39 // pred_fallthru
        _
      %v247 = vld [vmem:[%s237] sm:$0xff]
      %v248 = vld [vmem:[#allocation2] sm:$0x1]
      %vm249 = vcmask 195584
      %v250 = vsel %vm249, %v247, 0.0
      %v251 = vrot.slane %v250, 4
      %v252 = vadd.f32 %v250, %v251
      %v253 = vrot.slane %v252, 2
      %v254 = vadd.f32 %v252, %v253
      %v255 = vrot.slane %v254, 1
      %v256 = vadd.f32 %v254, %v255
      %v257 = vadd.f32 %v248, %v256
      %vm258 = vcmask 188416
      %259 = vst.msk [vmem:[#allocation2] sm:$0x1] %vm258, %v257
      // Predicated region
      $region45: #{tpu_custom_call.1} parent=39 // pred_check
        %p260 = pneg %p241
      $region46: #{tpu_custom_call.1} parent=39 // pred_check_branch
        %262 = sbr.rel (%p260) target = $region48
      $region47: #{tpu_custom_call.1} parent=39 // pred_region
        %v263 = vld [vmem:[#allocation2] sm:$0x1]
        %v264 = vld [vmem:[%s2] sm:$0x1]
        %v265 = vld [vmem:[%s1] sm:$0xff]
        %v266 = vld [vmem:[%s1 + $0x8] sm:$0xff]
        %v267 = vld [vmem:[%s1 + $0x10] sm:$0xff]
        %v269 = vsel %vm249, %v263, 0
        %271 = vmatprep.subr.mxu0 0.0
        %272 = vmatpush1.msra.mxu0 %v265
        %273 = vmatprep.subr.mxu0 0.0
        %274 = vmatpush1.msra.mxu0 %v266
        %275 = vmatprep.subr.mxu0 0.0
        %276 = vmatpush1.msra.mxu0 %v267
        %277 = vmatprep.subr.mxu0 0.0
        %278 = vmatpush1.msra.mxu0 0.0
        %279 = vmatprep.subr.mxu0 0.0
        %280 = vmatpush1.msra.mxu0 0.0
        %281 = vmatprep.subr.mxu0 0.0
        %282 = vmatpush1.msra.mxu0 0.0
        %283 = vmatprep.subr.mxu0 0.0
        %284 = vmatpush1.msra.mxu0 0.0
        %285 = vmatprep.subr.mxu0 0.0
        %286 = vmatpush1.msra.mxu0 0.0
        %287 = vmatprep.subr.mxu0 0.0
        %288 = vmatpush1.msra.mxu0 0.0
        %289 = vmatprep.subr.mxu0 0.0
        %290 = vmatpush1.msra.mxu0 0.0
        %291 = vmatprep.subr.mxu0 0.0
        %292 = vmatpush1.msra.mxu0 0.0
        %293 = vmatprep.subr.mxu0 0.0
        %294 = vmatpush1.msra.mxu0 0.0
        %295 = vmatprep.subr.mxu0 0.0
        %296 = vmatpush1.msra.mxu0 0.0
        %297 = vmatprep.subr.mxu0 0.0
        %298 = vmatpush1.msra.mxu0 0.0
        %299 = vmatprep.subr.mxu0 0.0
        %300 = vmatpush1.msra.mxu0 0.0
        %301 = vmatprep.subr.mxu0 0.0
        %302 = vmatpush1.msra.mxu0 0.0
        %303 = vmatprep.subr.mxu0 0.0
        %304 = vmatpush1.msra.mxu0 0.0
        %305 = vmatprep.subr.mxu0 0.0
        %306 = vmatpush1.msra.mxu0 0.0
        %307 = vmatprep.subr.mxu0 0.0
        %308 = vmatpush1.msra.mxu0 0.0
        %309 = vmatprep.subr.mxu0 0.0
        %310 = vmatpush1.msra.mxu0 0.0
        %311 = vmatprep.subr.mxu0 0.0
        %312 = vmatpush1.msra.mxu0 0.0
        %313 = vmatprep.subr.mxu0 0.0
        %314 = vmatpush1.msra.mxu0 0.0
        %315 = vmatprep.subr.mxu0 0.0
        %316 = vmatpush1.msra.mxu0 0.0
        %317 = vmatprep.subr.mxu0 0.0
        %318 = vmatpush1.msra.mxu0 0.0
        %319 = vmatprep.subr.mxu0 0.0
        %320 = vmatpush1.msra.mxu0 0.0
        %321 = vmatprep.subr.mxu0 0.0
        %322 = vmatpush1.msra.mxu0 0.0
        %323 = vmatprep.subr.mxu0 0.0
        %324 = vmatpush1.msra.mxu0 0.0
        %325 = vmatprep.subr.mxu0 0.0
        %326 = vmatpush1.msra.mxu0 0.0
        %327 = vmatprep.subr.mxu0 0.0
        %328 = vmatpush1.msra.mxu0 0.0
        %329 = vmatprep.subr.mxu0 0.0
        %330 = vmatpush1.msra.mxu0 0.0
        %331 = vmatprep.subr.mxu0 0.0
        %332 = vmatpush1.msra.mxu0 0.0
        %333 = vmatprep.subr.mxu0 0.0
        %334 = vmatpush1.msra.mxu0 0.0
        %335 = vmatprep.mubr.f32.mxu0 0.0
        %336 = vmatmul.mubr.f32.gmra.mrb[0].mxu0 %v269
        %v337 = vpop.f32.mrb[0].mxu0
        %v338 = vadd.f32 %v264, %v337
        %v339 = vpop.f32.mrb[0].mxu0
        %340 = vdwg.mxu0
        %v341 = vxor.u32 %v338, 2147483648
        %v342 = vmul.f32 %v341, 1.442695
        %v343 = vpow.pop %v342
        %v344 = vadd.f32 %v343, 1.0
        %v345 = vrcp.pop %v344
        %v346 = vmul.f32 1.0, %v345
        %v347 = vld [vmem:[%s3] sm:$0xff]
        %v348 = vld [vmem:[%s3 + $0x8] sm:$0xff]
        %v349 = vld [vmem:[%s3 + $0x10] sm:$0xff]
        %v350 = vld [vmem:[%s3 + $0x18] sm:$0xff]
        %v352 = vlaneseq
        %v353 = vshrl.u32 %v352, 7
        %v354 = vsub.s32 0, %v353
        %v355 = vrot.slane %v264, %v354
        %356 = vrot.lane.b32.xlu0 %v355, 96
        %v357 = vpop.permute.xlu0 %356
        %vm359 = vcmask 261120
        %v361 = vsel %vm359, %v346, 0
        %363 = vmatprep.subr.mxu0 0.0
        %364 = vmatpush1.msra.mxu0 %v347
        %365 = vmatprep.subr.mxu0 0.0
        %366 = vmatpush1.msra.mxu0 %v348
        %367 = vmatprep.subr.mxu0 0.0
        %368 = vmatpush1.msra.mxu0 %v349
        %369 = vmatprep.subr.mxu0 0.0
        %370 = vmatpush1.msra.mxu0 %v350
        %371 = vmatprep.subr.mxu0 0.0
        %372 = vmatpush1.msra.mxu0 0.0
        %373 = vmatprep.subr.mxu0 0.0
        %374 = vmatpush1.msra.mxu0 0.0
        %375 = vmatprep.subr.mxu0 0.0
        %376 = vmatpush1.msra.mxu0 0.0
        %377 = vmatprep.subr.mxu0 0.0
        %378 = vmatpush1.msra.mxu0 0.0
        %379 = vmatprep.subr.mxu0 0.0
        %380 = vmatpush1.msra.mxu0 0.0
        %381 = vmatprep.subr.mxu0 0.0
        %382 = vmatpush1.msra.mxu0 0.0
        %383 = vmatprep.subr.mxu0 0.0
        %384 = vmatpush1.msra.mxu0 0.0
        %385 = vmatprep.subr.mxu0 0.0
        %386 = vmatpush1.msra.mxu0 0.0
        %387 = vmatprep.subr.mxu0 0.0
        %388 = vmatpush1.msra.mxu0 0.0
        %389 = vmatprep.subr.mxu0 0.0
        %390 = vmatpush1.msra.mxu0 0.0
        %391 = vmatprep.subr.mxu0 0.0
        %392 = vmatpush1.msra.mxu0 0.0
        %393 = vmatprep.subr.mxu0 0.0
        %394 = vmatpush1.msra.mxu0 0.0
        %395 = vmatprep.subr.mxu0 0.0
        %396 = vmatpush1.msra.mxu0 0.0
        %397 = vmatprep.subr.mxu0 0.0
        %398 = vmatpush1.msra.mxu0 0.0
        %399 = vmatprep.subr.mxu0 0.0
        %400 = vmatpush1.msra.mxu0 0.0
        %401 = vmatprep.subr.mxu0 0.0
        %402 = vmatpush1.msra.mxu0 0.0
        %403 = vmatprep.subr.mxu0 0.0
        %404 = vmatpush1.msra.mxu0 0.0
        %405 = vmatprep.subr.mxu0 0.0
        %406 = vmatpush1.msra.mxu0 0.0
        %407 = vmatprep.subr.mxu0 0.0
        %408 = vmatpush1.msra.mxu0 0.0
        %409 = vmatprep.subr.mxu0 0.0
        %410 = vmatpush1.msra.mxu0 0.0
        %411 = vmatprep.subr.mxu0 0.0
        %412 = vmatpush1.msra.mxu0 0.0
        %413 = vmatprep.subr.mxu0 0.0
        %414 = vmatpush1.msra.mxu0 0.0
        %415 = vmatprep.subr.mxu0 0.0
        %416 = vmatpush1.msra.mxu0 0.0
        %417 = vmatprep.subr.mxu0 0.0
        %418 = vmatpush1.msra.mxu0 0.0
        %419 = vmatprep.subr.mxu0 0.0
        %420 = vmatpush1.msra.mxu0 0.0
        %421 = vmatprep.subr.mxu0 0.0
        %422 = vmatpush1.msra.mxu0 0.0
        %423 = vmatprep.subr.mxu0 0.0
        %424 = vmatpush1.msra.mxu0 0.0
        %425 = vmatprep.subr.mxu0 0.0
        %426 = vmatpush1.msra.mxu0 0.0
        %427 = vmatprep.mubr.f32.mxu0 0.0
        %428 = vmatmul.mubr.f32.gmra.mrb[0].mxu0 %v361
        %v429 = vpop.f32.mrb[0].mxu0
        %v430 = vadd.f32 %v357, %v429
        %v431 = vpop.f32.mrb[0].mxu0
        %432 = vdwg.mxu0
        %v433 = vxor.u32 %v430, 2147483648
        %v434 = vmul.f32 %v433, 1.442695
        %v435 = vpow.pop %v434
        %v436 = vadd.f32 %v435, 1.0
        %v437 = vrcp.pop %v436
        %v438 = vmul.f32 1.0, %v437
        %v439 = vld [vmem:[%s4] sm:$0xff]
        %v440 = vld [vmem:[%s4 + $0x8] sm:$0xff]
        %441 = vrot.lane.b32.xlu0 %v355, 80
        %v442 = vpop.permute.xlu0 %441
        %vm444 = vcmask 130048
        %v446 = vsel %vm444, %v438, 0
        %448 = vmatprep.subr.mxu0 0.0
        %449 = vmatpush1.msra.mxu0 %v439
        %450 = vmatprep.subr.mxu0 0.0
        %451 = vmatpush1.msra.mxu0 %v440
        %452 = vmatprep.subr.mxu0 0.0
        %453 = vmatpush1.msra.mxu0 0.0
        %454 = vmatprep.subr.mxu0 0.0
        %455 = vmatpush1.msra.mxu0 0.0
        %456 = vmatprep.subr.mxu0 0.0
        %457 = vmatpush1.msra.mxu0 0.0
        %458 = vmatprep.subr.mxu0 0.0
        %459 = vmatpush1.msra.mxu0 0.0
        %460 = vmatprep.subr.mxu0 0.0
        %461 = vmatpush1.msra.mxu0 0.0
        %462 = vmatprep.subr.mxu0 0.0
        %463 = vmatpush1.msra.mxu0 0.0
        %464 = vmatprep.subr.mxu0 0.0
        %465 = vmatpush1.msra.mxu0 0.0
        %466 = vmatprep.subr.mxu0 0.0
        %467 = vmatpush1.msra.mxu0 0.0
        %468 = vmatprep.subr.mxu0 0.0
        %469 = vmatpush1.msra.mxu0 0.0
        %470 = vmatprep.subr.mxu0 0.0
        %471 = vmatpush1.msra.mxu0 0.0
        %472 = vmatprep.subr.mxu0 0.0
        %473 = vmatpush1.msra.mxu0 0.0
        %474 = vmatprep.subr.mxu0 0.0
        %475 = vmatpush1.msra.mxu0 0.0
        %476 = vmatprep.subr.mxu0 0.0
        %477 = vmatpush1.msra.mxu0 0.0
        %478 = vmatprep.subr.mxu0 0.0
        %479 = vmatpush1.msra.mxu0 0.0
        %480 = vmatprep.subr.mxu0 0.0
        %481 = vmatpush1.msra.mxu0 0.0
        %482 = vmatprep.subr.mxu0 0.0
        %483 = vmatpush1.msra.mxu0 0.0
        %484 = vmatprep.subr.mxu0 0.0
        %485 = vmatpush1.msra.mxu0 0.0
        %486 = vmatprep.subr.mxu0 0.0
        %487 = vmatpush1.msra.mxu0 0.0
        %488 = vmatprep.subr.mxu0 0.0
        %489 = vmatpush1.msra.mxu0 0.0
        %490 = vmatprep.subr.mxu0 0.0
        %491 = vmatpush1.msra.mxu0 0.0
        %492 = vmatprep.subr.mxu0 0.0
        %493 = vmatpush1.msra.mxu0 0.0
        %494 = vmatprep.subr.mxu0 0.0
        %495 = vmatpush1.msra.mxu0 0.0
        %496 = vmatprep.subr.mxu0 0.0
        %497 = vmatpush1.msra.mxu0 0.0
        %498 = vmatprep.subr.mxu0 0.0
        %499 = vmatpush1.msra.mxu0 0.0
        %500 = vmatprep.subr.mxu0 0.0
        %501 = vmatpush1.msra.mxu0 0.0
        %502 = vmatprep.subr.mxu0 0.0
        %503 = vmatpush1.msra.mxu0 0.0
        %504 = vmatprep.subr.mxu0 0.0
        %505 = vmatpush1.msra.mxu0 0.0
        %506 = vmatprep.subr.mxu0 0.0
        %507 = vmatpush1.msra.mxu0 0.0
        %508 = vmatprep.subr.mxu0 0.0
        %509 = vmatpush1.msra.mxu0 0.0
        %510 = vmatprep.subr.mxu0 0.0
        %511 = vmatpush1.msra.mxu0 0.0
        %512 = vmatprep.mubr.f32.mxu0 0.0
        %513 = vmatmul.mubr.f32.gmra.mrb[0].mxu0 %v446
        %v514 = vpop.f32.mrb[0].mxu0
        %v515 = vadd.f32 %v442, %v514
        %v516 = vpop.f32.mrb[0].mxu0
        %517 = vdwg.mxu0
        %v518 = vxor.u32 %v515, 2147483648
        %v519 = vmul.f32 %v518, 1.442695
        %v520 = vpow.pop %v519
        %v521 = vadd.f32 %v520, 1.0
        %v522 = vrcp.pop %v521
        %v523 = vmul.f32 1.0, %v522
        %vm524 = vcmask 0
        %525 = vst.msk [vmem:[%s240] sm:$0x1] %vm524, %v523
      $region48: #{tpu_custom_call.1} parent=39 // pred_fallthru
        _
      %p526 = scmp.lt.s32.totalorder %s20, 1
      %s527 = scalar_select %p526, %s20, 1
      %s528 = scalar_lea.vmem %s5, %s527
      // Predicated region
      $region49: #{tpu_custom_call.1} parent=39 // pred_check
        %p529 = pneg %p158
      $region50: #{tpu_custom_call.1} parent=39 // pred_check_branch
        %531 = sbr.rel (%p529) target = $region52
      $region51: #{tpu_custom_call.1} parent=39 // pred_region
        _
      $region52: #{tpu_custom_call.1} parent=39 // pred_fallthru
        _
    $region40: #{tpu_custom_call.1} parent=5 // pred_fallthru
      _
    %p532 = scmp.le.s32.totalorder 2, %s11
    // Predicated region
    $region53: #{tpu_custom_call.1} parent=5 // pred_check
      %p533 = pneg %p532
    $region54: #{tpu_custom_call.1} parent=5 // pred_check_branch
      %535 = sbr.rel (%p533) target = $region56
    $region55: #{tpu_custom_call.1} parent=5 // pred_region
      %s536 = ssub.s32 %s11, 2
      // Predicated region
      $region57: #{tpu_custom_call.1} parent=55 // pred_check
        %p537 = pneg %p164
      $region58: #{tpu_custom_call.1} parent=55 // pred_check_branch
        %539 = sbr.rel (%p537) target = $region60
      $region59: #{tpu_custom_call.1} parent=55 // pred_region
        %p540 = scmp.lt.s32.totalorder %s22, 1
        %s541 = scalar_select %p540, %s22, 1
        %s542 = scalar_lea.vmem %s5, %s541
      $region60: #{tpu_custom_call.1} parent=55 // pred_fallthru
        _
    $region56: #{tpu_custom_call.1} parent=5 // pred_fallthru
      _
  $region6: #{tpu_custom_call.1} parent=0 // loop_footer
    %s15 = sadd.s32 1, %s11
  $region7: #{tpu_custom_call.1} parent=0 // loop_footer_branch
    %10 = sbr.rel target = $region3
  $region8: #{tpu_custom_call.1} parent=0 // loop_exit
    _

</llo_original>
